<compile_context>
chip_gen: v7x
topology: tpu7x:2x2x1
jax: 0.10.0
libtpu: 0.0.40
codegen_flags: <defaults>
</compile_context>

<pallas_src>
import functools

import numpy as np
import jax
import jax.numpy as jnp
from jax import lax
from jax.experimental import pallas as pl
from jax.experimental.pallas import tpu as pltpu


# ----------------------------------------------------------------------------
# In-kernel math helpers (traced inside Pallas kernels)
# ----------------------------------------------------------------------------

def _ln(x, g, b, eps):
    mu = jnp.mean(x, axis=-1, keepdims=True)
    var = jnp.mean((x - mu) ** 2, axis=-1, keepdims=True)
    return (x - mu) * lax.rsqrt(var + eps) * g + b


def _gelu_tanh(x):
    # tanh-form GELU: lowers to the EUP slot on TPU (essentially free);
    # ~1e-3 numerics delta vs torch's erf-based nn.GELU().
    c = 0.7978845608028654  # sqrt(2/pi)
    return 0.5 * x * (1.0 + jnp.tanh(c * (x + 0.044715 * x * x * x)))


# ----------------------------------------------------------------------------
# Kernel 1: tube-embedding conv + spatio-temporal max + pos-embed (+ReLU),
#           gridded over token tiles.
# ----------------------------------------------------------------------------
# Note on semantics: the reference P4DConv here has in_planes=0, an identity
# mlp (mlp_planes=[dim], no BN/activation), spatial_pooling='max' AND
# temporal_pooling='max', so a single joint max over all J = tk*nsamples
# displacement groups equals max-over-neighbors followed by max-over-taps.

def _embed_kernel(disp_ref, xyzt_ref, wd_ref, wpos_ref, bpos_ref, o_ref,
                  *, n_group, emb_relu):
    # disp_ref block: (J, R_tile, 4); running max over the J groups.
    feat = jnp.dot(disp_ref[0], wd_ref[...], preferred_element_type=jnp.float32)

    def body(j, acc):
        y = jnp.dot(disp_ref[j], wd_ref[...], preferred_element_type=jnp.float32)
        return jnp.maximum(acc, y)

    feat = lax.fori_loop(1, n_group, body, feat)

    # pos_embedding: Conv1d(4 -> dim, kernel=1) == per-token linear
    pos = jnp.dot(xyzt_ref[...], wpos_ref[...],
                  preferred_element_type=jnp.float32) + bpos_ref[...]
    emb = feat + pos
    if emb_relu:
        emb = jnp.maximum(emb, 0.0)
    o_ref[...] = emb


def pallas_embed(disp, xyzt, w_d, w_pos, b_pos, *, dim, emb_relu):
    """disp: (J, R, 4), xyzt: (R, 4) -> fused embedding (R, dim) f32."""
    J, R, _ = disp.shape
    r_tile = min(256, ((R + 7) // 8) * 8)            # sublane-aligned token tile
    R_pad = ((R + r_tile - 1) // r_tile) * r_tile
    if R_pad != R:
        disp = jnp.pad(disp, ((0, 0), (0, R_pad - R), (0, 0)))
        xyzt = jnp.pad(xyzt, ((0, R_pad - R), (0, 0)))

    out = pl.pallas_call(
        functools.partial(_embed_kernel, n_group=J, emb_relu=emb_relu),
        grid=(R_pad // r_tile,),
        out_shape=jax.ShapeDtypeStruct((R_pad, dim), jnp.float32),
        in_specs=[
            pl.BlockSpec((J, r_tile, 4), lambda r: (0, r, 0)),
            pl.BlockSpec((r_tile, 4), lambda r: (r, 0)),
            pl.BlockSpec((4, dim), lambda r: (0, 0)),
            pl.BlockSpec((4, dim), lambda r: (0, 0)),
            pl.BlockSpec((1, dim), lambda r: (0, 0)),
        ],
        out_specs=pl.BlockSpec((r_tile, dim), lambda r: (r, 0)),
        compiler_params=pltpu.CompilerParams(dimension_semantics=("parallel",)),
    )(disp.astype(jnp.float32), xyzt.astype(jnp.float32),
      w_d.astype(jnp.float32), w_pos.astype(jnp.float32),
      b_pos.reshape(1, dim).astype(jnp.float32))
    return out[:R]


# ----------------------------------------------------------------------------
# Kernel 2: whole transformer stack, grid=(B, depth), activations VMEM-resident
# ----------------------------------------------------------------------------

def _transformer_kernel(h_ref, ln1g_ref, ln1b_ref, wqkv_ref, wo_ref, bo_ref,
                        ln2g_ref, ln2b_ref, w1_ref, b1_ref, w2_ref, b2_ref,
                        o_ref, *, heads, dh, eps):
    d = pl.program_id(1)

    # Depth axis is "arbitrary" and the output block index is constant across
    # it, so o_ref stays resident in VMEM; seed it with the input at layer 0.
    @pl.when(d == 0)
    def _():
        o_ref[...] = h_ref[...]

    inner = heads * dh
    h = o_ref[0]                                                   # (L, dim)

    # ---- multi-head self-attention with PreNorm --------------------------
    x = _ln(h, ln1g_ref[0], ln1b_ref[0], eps)
    # single fused QKV matmul; attention scale was folded into the Q columns
    qkv = jnp.dot(x, wqkv_ref[0], preferred_element_type=jnp.float32)  # (L, 3*inner)

    heads_out = []
    for hh in range(heads):                                        # static, small
        q = qkv[:, hh * dh:(hh + 1) * dh]
        k = qkv[:, inner + hh * dh:inner + (hh + 1) * dh]
        v = qkv[:, 2 * inner + hh * dh:2 * inner + (hh + 1) * dh]
        # contract on dh, no explicit transpose of k
        s = lax.dot_general(q, k, (((1,), (1,)), ((), ())),
                            preferred_element_type=jnp.float32)    # (L, L)
        m = jnp.max(s, axis=-1, keepdims=True)
        p = jnp.exp(s - m)
        p = p / jnp.sum(p, axis=-1, keepdims=True)
        heads_out.append(jnp.dot(p, v, preferred_element_type=jnp.float32))
    att = heads_out[0] if heads == 1 else jnp.concatenate(heads_out, axis=-1)
    att = jnp.dot(att, wo_ref[0], preferred_element_type=jnp.float32) + bo_ref[0]
    h = h + att

    # ---- feed-forward with PreNorm ----------------------------------------
    x = _ln(h, ln2g_ref[0], ln2b_ref[0], eps)
    f = jnp.dot(x, w1_ref[0], preferred_element_type=jnp.float32) + b1_ref[0]
    f = _gelu_tanh(f)
    f = jnp.dot(f, w2_ref[0], preferred_element_type=jnp.float32) + b2_ref[0]
    o_ref[0] = h + f


def pallas_transformer(h, stk, *, heads, dh, eps=1e-5):
    """h: (B, L, dim).  stk: dict of per-layer weights stacked on depth axis."""
    B, L, dim = h.shape
    depth = stk["w_qkv"].shape[0]
    inner = heads * dh
    mlp_dim = stk["w_ff1"].shape[2]

    hmap = lambda b, d: (b, 0, 0)
    wmap = lambda b, d: (d, 0, 0)

    in_specs = [
        pl.BlockSpec((1, L, dim), hmap),
        pl.BlockSpec((1, 1, dim), wmap),           # ln1_g
        pl.BlockSpec((1, 1, dim), wmap),           # ln1_b
        pl.BlockSpec((1, dim, 3 * inner), wmap),   # w_qkv
        pl.BlockSpec((1, inner, dim), wmap),       # w_o
        pl.BlockSpec((1, 1, dim), wmap),           # b_o
        pl.BlockSpec((1, 1, dim), wmap),           # ln2_g
        pl.BlockSpec((1, 1, dim), wmap),           # ln2_b
        pl.BlockSpec((1, dim, mlp_dim), wmap),     # w_ff1
        pl.BlockSpec((1, 1, mlp_dim), wmap),       # b_ff1
        pl.BlockSpec((1, mlp_dim, dim), wmap),     # w_ff2
        pl.BlockSpec((1, 1, dim), wmap),           # b_ff2
    ]
    # TODO(synk): at real P4Transformer sizes (dim=1024, mlp_dim=2048, L~1e3)
    # set vmem_limit_bytes per generation and/or tile L / mlp_dim.
    return pl.pallas_call(
        functools.partial(_transformer_kernel, heads=heads, dh=dh, eps=eps),
        grid=(B, depth),
        out_shape=jax.ShapeDtypeStruct((B, L, dim), jnp.float32),
        in_specs=in_specs,
        out_specs=pl.BlockSpec((1, L, dim), hmap),
        compiler_params=pltpu.CompilerParams(
            dimension_semantics=("parallel", "arbitrary")),
    )(h.astype(jnp.float32), stk["ln1_g"], stk["ln1_b"], stk["w_qkv"],
      stk["w_o"], stk["b_o"], stk["ln2_g"], stk["ln2_b"], stk["w_ff1"],
      stk["b_ff1"], stk["w_ff2"], stk["b_ff2"])


# ----------------------------------------------------------------------------
# Kernel 3: fused point-pool + mlp_head + temporal interpolation + log_softmax
# ----------------------------------------------------------------------------

def _head_kernel(h_ref, lng_ref, lnb_ref, w1_ref, b1_ref, w2_ref, b2_ref,
                 m_ref, o_ref, *, new_t, npoints, eps):
    x = h_ref[0]                                                  # (L, dim)
    # max over the Np points of each frame (token order = frame-major)
    rows = []
    for t in range(new_t):
        seg = x[t * npoints:(t + 1) * npoints]
        rows.append(jnp.max(seg, axis=0, keepdims=True))
    pooled = jnp.concatenate(rows, axis=0) if new_t > 1 else rows[0]   # (new_t, dim)

    y = _ln(pooled, lng_ref[...], lnb_ref[...], eps)
    f = jnp.dot(y, w1_ref[...], preferred_element_type=jnp.float32) + b1_ref[...]
    f = _gelu_tanh(f)
    logits = jnp.dot(f, w2_ref[...],
                     preferred_element_type=jnp.float32) + b2_ref[...]  # (new_t, C)
    # F.interpolate(mode='linear', align_corners=True) over time == fixed matrix
    z = jnp.dot(m_ref[...], logits, preferred_element_type=jnp.float32)  # (T, C)
    mx = jnp.max(z, axis=-1, keepdims=True)
    z = z - mx
    lse = jnp.log(jnp.sum(jnp.exp(z), axis=-1, keepdims=True))
    o_ref[0] = z - lse                                            # log_softmax over classes


def pallas_head(h, params, interp_m, *, new_t, npoints, num_class, eps=1e-5):
    B, L, dim = h.shape
    T = interp_m.shape[0]
    mlp_dim = params["head_w1"].shape[1]

    zmap2 = lambda b: (0, 0)
    in_specs = [
        pl.BlockSpec((1, L, dim), lambda b: (b, 0, 0)),
        pl.BlockSpec((1, dim), zmap2),
        pl.BlockSpec((1, dim), zmap2),
        pl.BlockSpec((dim, mlp_dim), zmap2),
        pl.BlockSpec((1, mlp_dim), zmap2),
        pl.BlockSpec((mlp_dim, num_class), zmap2),
        pl.BlockSpec((1, num_class), zmap2),
        pl.BlockSpec((T, new_t), zmap2),
    ]
    return pl.pallas_call(
        functools.partial(_head_kernel, new_t=new_t, npoints=npoints, eps=eps),
        grid=(B,),
        out_shape=jax.ShapeDtypeStruct((B, T, num_class), jnp.float32),
        in_specs=in_specs,
        out_specs=pl.BlockSpec((1, T, num_class), lambda b: (b, 0, 0)),
        compiler_params=pltpu.CompilerParams(dimension_semantics=("parallel",)),
    )(h.astype(jnp.float32),
      params["head_ln_g"].reshape(1, dim).astype(jnp.float32),
      params["head_ln_b"].reshape(1, dim).astype(jnp.float32),
      params["head_w1"].astype(jnp.float32),
      params["head_b1"].reshape(1, mlp_dim).astype(jnp.float32),
      params["head_w2"].astype(jnp.float32),
      params["head_b2"].reshape(1, num_class).astype(jnp.float32),
      interp_m.astype(jnp.float32))


# ----------------------------------------------------------------------------
# Plain-JAX glue for irregular point-cloud ops (no clean Pallas equivalent)
# ----------------------------------------------------------------------------

def fps_single(xyz, npoint):
    # TODO(synk): furthest point sampling is a sequential data-dependent argmax
    # loop; kept in plain JAX (matches pointnet2: starts at index 0).
    N = xyz.shape[0]

    def body(i, carry):
        sel, dists, last = carry
        d = jnp.sum((xyz - xyz[last]) ** 2, axis=-1)
        dists = jnp.minimum(dists, d)
        nxt = jnp.argmax(dists).astype(jnp.int32)
        sel = sel.at[i].set(nxt)
        return sel, dists, nxt

    sel0 = jnp.zeros((npoint,), jnp.int32)
    dists0 = jnp.full((N,), 1e10, jnp.float32)
    sel, _, _ = lax.fori_loop(1, npoint, body, (sel0, dists0, jnp.int32(0)))
    return sel


def ball_query_single(neighbor_xyz, anchor_xyz, radius, k):
    # TODO(synk): data-dependent neighbor index construction; plain JAX.
    # Matches pointnet2 ball_query: first k in-radius indices, empty slots
    # filled with the first hit (0 if no hit).
    N = neighbor_xyz.shape[0]
    d2 = jnp.sum((anchor_xyz[:, None, :] - neighbor_xyz[None, :, :]) ** 2, axis=-1)
    in_ball = d2 < radius * radius
    keys = jnp.where(in_ball, jnp.arange(N)[None, :], N)
    keys = jnp.sort(keys, axis=-1)[:, :k]
    first = keys[:, :1]
    idx = jnp.where(keys == N, first, keys)
    idx = jnp.where(idx == N, 0, idx)
    return idx.astype(jnp.int32)


def build_tube_inputs(xyzs, cfg):
    """Build (J, R, 4) displacement groups and (R, 4) (x,y,z,t+1) anchor tokens
    for ALL output frames at once.  R is ordered (batch, frame, point) ==
    transformer token order."""
    B, T, N, _ = xyzs.shape
    radius, nsamples = cfg["radius"], cfg["nsamples"]
    spatial_stride = cfg["spatial_stride"]
    tk, ts = cfg["temporal_kernel_size"], cfg["temporal_stride"]
    pad = (1, 0)
    Np = N // spatial_stride

    frames = xyzs
    if pad[0] > 0:
        frames = jnp.concatenate(
            [jnp.repeat(frames[:, :1], pad[0], axis=1), frames], axis=1)
    if pad[1] > 0:
        frames = jnp.concatenate(
            [frames, jnp.repeat(frames[:, -1:], pad[1], axis=1)], axis=1)
    Lf = frames.shape[1]
    half = tk // 2

    anchors, disps = [], []
    for t in range(half, Lf - half, ts):
        anchor_frame = frames[:, t]                                          # (B, N, 3)
        anchor_idx = jax.vmap(lambda p: fps_single(p, Np))(anchor_frame)     # (B, Np)
        anchor_xyz = jnp.take_along_axis(anchor_frame, anchor_idx[..., None], axis=1)

        per_off = []
        for i in range(t - half, t + half + 1):
            neigh = frames[:, i]                                             # (B, N, 3)
            idx = jax.vmap(
                lambda nb, an: ball_query_single(nb, an, radius, nsamples)
            )(neigh, anchor_xyz)                                             # (B, Np, k)
            grouped = jax.vmap(lambda nb, ix: nb[ix])(neigh, idx)            # (B, Np, k, 3)
            xyz_disp = grouped - anchor_xyz[:, :, None, :]
            t_disp = jnp.full((B, Np, nsamples, 1), float(i - t), jnp.float32)
            per_off.append(jnp.concatenate([xyz_disp, t_disp], axis=-1))     # (B, Np, k, 4)
        disps.append(jnp.stack(per_off, axis=0))                             # (tk, B, Np, k, 4)
        anchors.append(anchor_xyz)

    new_t = len(anchors)
    anchor_all = jnp.stack(anchors, axis=1)                                  # (B, new_t, Np, 3)
    disp = jnp.stack(disps, axis=0)                                          # (new_t, tk, B, Np, k, 4)
    disp = jnp.transpose(disp, (1, 4, 2, 0, 3, 5))                           # (tk, k, B, new_t, Np, 4)
    J = tk * nsamples
    R = B * new_t * Np
    disp = disp.reshape(J, R, 4)

    tvals = jnp.broadcast_to(
        jnp.arange(1, new_t + 1, dtype=jnp.float32)[None, :, None, None],
        (B, new_t, Np, 1))
    xyzt = jnp.concatenate([anchor_all, tvals], axis=-1).reshape(R, 4)
    return disp, xyzt, new_t, Np


def interp_matrix(t_in, t_out):
    """Static M (t_out, t_in): M @ x == F.interpolate(x, linear, align_corners=True)."""
    if t_in == 1:
        return jnp.ones((t_out, 1), jnp.float32)
    if t_out == 1:
        pos = np.zeros((1,), np.float64)
    else:
        pos = np.arange(t_out, dtype=np.float64) * (t_in - 1) / (t_out - 1)
    i0 = np.clip(np.floor(pos).astype(np.int64), 0, t_in - 2)
    frac = (pos - i0).astype(np.float32)
    m = np.zeros((t_out, t_in), np.float32)
    m[np.arange(t_out), i0] += 1.0 - frac
    m[np.arange(t_out), i0 + 1] += frac
    return jnp.asarray(m)


# ----------------------------------------------------------------------------
# Full forward
# ----------------------------------------------------------------------------

def p4transformer_forward(x, params, cfg):
    """x: (B, T, 3, N) -- same layout as the PyTorch module input."""
    B, T, _, N = x.shape
    dim, heads, dh = cfg["dim"], cfg["heads"], cfg["dim_head"]

    xyzs_in = jnp.transpose(x, (0, 1, 3, 2))                       # (B, T, N, 3)
    disp, xyzt, new_t, Np = build_tube_inputs(xyzs_in, cfg)
    L = new_t * Np

    # fused: tube-embedding conv + spatial/temporal max-pool + pos-embedding
    # + add (+optional ReLU) -> transformer input embedding
    emb = pallas_embed(disp, xyzt, params["conv_d_w"], params["pos_w"],
                       params["pos_b"], dim=dim, emb_relu=cfg["emb_relu"])
    h = emb.reshape(B, L, dim)

    # all transformer layers in one pallas_call (depth on an "arbitrary" grid
    # axis; activations never leave VMEM between layers)
    h = pallas_transformer(h, params["layers"], heads=heads, dh=dh)

    # fused: max over points per frame + mlp_head + temporal interp + log_softmax
    M = interp_matrix(new_t, T)
    logprobs = pallas_head(h, params, M, new_t=new_t, npoints=Np,
                           num_class=cfg["num_class"])             # (B, T, C)
    pred = jnp.transpose(logprobs, (0, 2, 1))                      # (B, C, T)
    return {"pred": pred}


# ----------------------------------------------------------------------------
# Deterministic parameter init (dropout layers are identity in eval mode)
# ----------------------------------------------------------------------------

def init_params(key, cfg):
    dim, heads, dh = cfg["dim"], cfg["heads"], cfg["dim_head"]
    inner = heads * dh
    scale = dh ** -0.5
    mlp_dim, num_class, depth = cfg["mlp_dim"], cfg["num_class"], cfg["depth"]

    keys = jax.random.split(key, 8 + depth)

    def w(k, shape, s=0.1):
        return jax.random.normal(k, shape, jnp.float32) * s

    params = {
        "conv_d_w": w(keys[0], (4, dim)),          # P4DConv conv_d (bias=False)
        "pos_w": w(keys[1], (4, dim)),             # pos_embedding Conv1d weight
        "pos_b": w(keys[2], (dim,)),               # pos_embedding bias
        "head_ln_g": jnp.ones((dim,), jnp.float32),
        "head_ln_b": jnp.zeros((dim,), jnp.float32),
        "head_w1": w(keys[3], (dim, mlp_dim)),
        "head_b1": w(keys[4], (mlp_dim,)),
        "head_w2": w(keys[5], (mlp_dim, num_class)),
        "head_b2": w(keys[6], (num_class,)),
    }

    ln1_g, ln1_b, w_qkv, w_o, b_o = [], [], [], [], []
    ln2_g, ln2_b, w_ff1, b_ff1, w_ff2, b_ff2 = [], [], [], [], [], []
    for l in range(depth):
        lk = jax.random.split(keys[7 + l], 7)
        # Fused (dim, 3*inner) QKV weight; attention scale folded into the Q
        # columns at init (for real checkpoints, fold W_q *= dh**-0.5 at load).
        wqkv = w(lk[0], (dim, 3 * inner))
        wqkv = jnp.concatenate([wqkv[:, :inner] * scale, wqkv[:, inner:]], axis=1)
        ln1_g.append(jnp.ones((1, dim), jnp.float32))
        ln1_b.append(jnp.zeros((1, dim), jnp.float32))
        w_qkv.append(wqkv)
        w_o.append(w(lk[1], (inner, dim)))
        b_o.append(w(lk[2], (dim,)).reshape(1, dim))
        ln2_g.append(jnp.ones((1, dim), jnp.float32))
        ln2_b.append(jnp.zeros((1, dim), jnp.float32))
        w_ff1.append(w(lk[3], (dim, mlp_dim)))
        b_ff1.append(w(lk[4], (mlp_dim,)).reshape(1, mlp_dim))
        w_ff2.append(w(lk[5], (mlp_dim, dim)))
        b_ff2.append(w(lk[6], (dim,)).reshape(1, dim))

    params["layers"] = {
        "ln1_g": jnp.stack(ln1_g), "ln1_b": jnp.stack(ln1_b),
        "w_qkv": jnp.stack(w_qkv), "w_o": jnp.stack(w_o), "b_o": jnp.stack(b_o),
        "ln2_g": jnp.stack(ln2_g), "ln2_b": jnp.stack(ln2_b),
        "w_ff1": jnp.stack(w_ff1), "b_ff1": jnp.stack(b_ff1),
        "w_ff2": jnp.stack(w_ff2), "b_ff2": jnp.stack(b_ff2),
    }
    return params


# ----------------------------------------------------------------------------
# Main
# ----------------------------------------------------------------------------

if __name__ == "__main__":
    cfg = {
        "radius": 0.5,
        "nsamples": 4,
        "spatial_stride": 4,
        "temporal_kernel_size": 3,
        "temporal_stride": 2,
        "dim": 32,
        "depth": 2,
        "heads": 2,
        "dim_head": 16,
        "mlp_dim": 64,
        "emb_relu": False,
        "num_class": 6,
    }
    B, T, N = 2, 4, 16  # input: (B, T, d=3, N) point-cloud sequence

    key = jax.random.PRNGKey(0)
    k_in, k_par = jax.random.split(key)
    x = jax.random.uniform(k_in, (B, T, 3, N), dtype=jnp.float32)
    params = init_params(k_par, cfg)

    out = p4transformer_forward(x, params, cfg)
    pred = jax.block_until_ready(out["pred"])
    assert pred.shape == (B, cfg["num_class"], T), pred.shape
    assert bool(jnp.all(jnp.isfinite(pred)))
    print("KERNEL_OK")
</pallas_src>

<mosaic_0001>
module attributes {stable_mosaic.version = 11 : i64} {
  func.func @_embed_kernel(%arg0: i32, %arg1: memref<12x16x4xf32, #tpu.memory_space<vmem>>, %arg2: memref<16x4xf32, #tpu.memory_space<vmem>>, %arg3: memref<4x32xf32, #tpu.memory_space<vmem>>, %arg4: memref<4x32xf32, #tpu.memory_space<vmem>>, %arg5: memref<1x32xf32, #tpu.memory_space<vmem>>, %arg6: memref<16x32xf32, #tpu.memory_space<vmem>>) attributes {dimension_semantics = [#tpu.dimension_semantics<parallel>], iteration_bounds = array<i64: 1>, scalar_prefetch = 0 : i64, scratch_operands = 0 : i64, tpu.core_type = #tpu.core_type<tc>, window_params = [{transform_indices = @transform_0, window_bounds = array<i64: 12, 16, 4>}, {transform_indices = @transform_1, window_bounds = array<i64: 16, 4>}, {pipeline_mode = #tpu.pipeline_mode<synchronous>, transform_indices = @transform_2, window_bounds = array<i64: 4, 32>}, {pipeline_mode = #tpu.pipeline_mode<synchronous>, transform_indices = @transform_3, window_bounds = array<i64: 4, 32>}, {pipeline_mode = #tpu.pipeline_mode<synchronous>, transform_indices = @transform_4, window_bounds = array<i64: 1, 32>}, {transform_indices = @transform_5, window_bounds = array<i64: 16, 32>}]} {
    %c0 = arith.constant 0 : index
    %c0_0 = arith.constant 0 : index
    %c0_1 = arith.constant 0 : index
    %0 = vector.load %arg1[%c0, %c0_0, %c0_1] : memref<12x16x4xf32, #tpu.memory_space<vmem>>, vector<1x16x4xf32>
    %1 = vector.shape_cast %0 : vector<1x16x4xf32> to vector<16x4xf32>
    %c0_2 = arith.constant 0 : index
    %c0_3 = arith.constant 0 : index
    %2 = vector.load %arg3[%c0_2, %c0_3] : memref<4x32xf32, #tpu.memory_space<vmem>>, vector<4x32xf32>
    %cst = arith.constant dense<0.000000e+00> : vector<16x32xf32>
    %3 = tpu.matmul %1, %2, %cst {dimension_numbers = #tpu.dot_dimension_numbers<[1], [0], [0], [1], [0, 0, 1, 1], [], []>} : vector<16x4xf32>, vector<4x32xf32>, vector<16x32xf32> -> vector<16x32xf32>
    %c1_i32 = arith.constant 1 : i32
    %c11_i32 = arith.constant 11 : i32
    %4 = arith.addi %c1_i32, %c11_i32 : i32
    %c1_i32_4 = arith.constant 1 : i32
    %5 = scf.for %arg7 = %c1_i32 to %4 step %c1_i32_4 iter_args(%arg8 = %3) -> (vector<16x32xf32>)  : i32 {
      %14 = arith.index_cast %arg7 : i32 to index
      %c0_15 = arith.constant 0 : index
      %c0_16 = arith.constant 0 : index
      %15 = vector.load %arg1[%14, %c0_15, %c0_16] : memref<12x16x4xf32, #tpu.memory_space<vmem>>, vector<1x16x4xf32>
      %16 = vector.shape_cast %15 : vector<1x16x4xf32> to vector<16x4xf32>
      %c0_17 = arith.constant 0 : index
      %c0_18 = arith.constant 0 : index
      %17 = vector.load %arg3[%c0_17, %c0_18] : memref<4x32xf32, #tpu.memory_space<vmem>>, vector<4x32xf32>
      %cst_19 = arith.constant dense<0.000000e+00> : vector<16x32xf32>
      %18 = tpu.matmul %16, %17, %cst_19 {dimension_numbers = #tpu.dot_dimension_numbers<[1], [0], [0], [1], [0, 0, 1, 1], [], []>} : vector<16x4xf32>, vector<4x32xf32>, vector<16x32xf32> -> vector<16x32xf32>
      %19 = arith.maximumf %arg8, %18 : vector<16x32xf32>
      scf.yield %19 : vector<16x32xf32>
    }
    %c11_i32_5 = arith.constant 11 : i32
    %c0_6 = arith.constant 0 : index
    %c0_7 = arith.constant 0 : index
    %6 = vector.load %arg2[%c0_6, %c0_7] : memref<16x4xf32, #tpu.memory_space<vmem>>, vector<16x4xf32>
    %c0_8 = arith.constant 0 : index
    %c0_9 = arith.constant 0 : index
    %7 = vector.load %arg4[%c0_8, %c0_9] : memref<4x32xf32, #tpu.memory_space<vmem>>, vector<4x32xf32>
    %cst_10 = arith.constant dense<0.000000e+00> : vector<16x32xf32>
    %8 = tpu.matmul %6, %7, %cst_10 {dimension_numbers = #tpu.dot_dimension_numbers<[1], [0], [0], [1], [0, 0, 1, 1], [], []>} : vector<16x4xf32>, vector<4x32xf32>, vector<16x32xf32> -> vector<16x32xf32>
    %c0_11 = arith.constant 0 : index
    %c0_12 = arith.constant 0 : index
    %9 = vector.load %arg5[%c0_11, %c0_12] : memref<1x32xf32, #tpu.memory_space<vmem>>, vector<1x32xf32>
    %10 = vector.broadcast %9 : vector<1x32xf32> to vector<16x32xf32>
    %11 = arith.addf %8, %10 : vector<16x32xf32>
    %12 = arith.addf %5, %11 : vector<16x32xf32>
    %c0_13 = arith.constant 0 : index
    %c0_14 = arith.constant 0 : index
    %13 = vector.load %arg6[%c0_13, %c0_14] : memref<16x32xf32, #tpu.memory_space<vmem>>, vector<16x32xf32>
    tpu.vector_store %arg6[%c0_13, %c0_14], %12 {strides = array<i32>} : memref<16x32xf32, #tpu.memory_space<vmem>>, vector<16x32xf32>,
    return
  }
  func.func @transform_0(%arg0: i32) -> (i32, i32, i32) {
    %c0_i32 = arith.constant 0 : i32
    %c0_i32_0 = arith.constant 0 : i32
    %c0_i32_1 = arith.constant 0 : i32
    return %c0_i32, %arg0, %c0_i32_0 : i32, i32, i32
  }
  func.func @transform_1(%arg0: i32) -> (i32, i32) {
    %c0_i32 = arith.constant 0 : i32
    %c0_i32_0 = arith.constant 0 : i32
    return %arg0, %c0_i32 : i32, i32
  }
  func.func @transform_2(%arg0: i32) -> (i32, i32) {
    %c0_i32 = arith.constant 0 : i32
    %c0_i32_0 = arith.constant 0 : i32
    %c0_i32_1 = arith.constant 0 : i32
    return %c0_i32, %c0_i32_0 : i32, i32
  }
  func.func @transform_3(%arg0: i32) -> (i32, i32) {
    %c0_i32 = arith.constant 0 : i32
    %c0_i32_0 = arith.constant 0 : i32
    %c0_i32_1 = arith.constant 0 : i32
    return %c0_i32, %c0_i32_0 : i32, i32
  }
  func.func @transform_4(%arg0: i32) -> (i32, i32) {
    %c0_i32 = arith.constant 0 : i32
    %c0_i32_0 = arith.constant 0 : i32
    %c0_i32_1 = arith.constant 0 : i32
    return %c0_i32, %c0_i32_0 : i32, i32
  }
  func.func @transform_5(%arg0: i32) -> (i32, i32) {
    %c0_i32 = arith.constant 0 : i32
    %c0_i32_0 = arith.constant 0 : i32
    return %arg0, %c0_i32 : i32, i32
  }
}

</mosaic_0001>

<llo_original>
// kernel: tpu_custom_call.1
$region0: #{tpu_custom_call.1}
  #allocation0 [shape = 'u32[]', space=smem, size = 0x4, offset = 0x4, fixed_abs, tag = 'smem constant byte address 0x4 - core index']
  #allocation1 [shape = 'u32[144,128]{1,0:T(1,128)}', space=vmem, size = 0x12000, scoped, tag = 'internal scratch']
  %s0 = inlined_call_operand.vmem [shape: f32[12,16,4], index: 0, kind: input, shape index: {}]
  %s1 = inlined_call_operand.vmem [shape: f32[16,4], index: 1, kind: input, shape index: {}]
  %s2 = inlined_call_operand.vmem [shape: f32[4,32], index: 2, kind: input, shape index: {}]
  %s3 = inlined_call_operand.vmem [shape: f32[4,32], index: 3, kind: input, shape index: {}]
  %s4 = inlined_call_operand.vmem [shape: f32[1,32], index: 4, kind: input, shape index: {}]
  %s5 = inlined_call_operand.hbm [shape: f32[16,32], index: 5, kind: output, shape index: {}]
  %s6 = sld [smem:[#allocation0]]
  $region37: #{tpu_custom_call.1} parent=0
    _
  %s8 = ssub.s32 1, %s6
  %s9 = scalar_select 0, %s8, %s6
  $region1: #{tpu_custom_call.1} parent=0
    #allocation2 [shape = 'u8[8192]{0}', space=vmem, size = 0x2000, scoped, tag = 'output window, operand 0, single buffered']
    #allocation3 [shape = 's32[1]{0}', space=sflag, size = 0x4, scoped, tag = 'scoped memory for tpu_custom_call.1']
    %10 = vsyncpa [#allocation3], 0
    // Predicated region
    $region2: #{tpu_custom_call.1} parent=1 // pred_check
      _
    $region3: #{tpu_custom_call.1} parent=1 // pred_check_branch
      %12 = sbr.rel (0) target = $region5
    $region4: #{tpu_custom_call.1} parent=1 // pred_region
      _
    $region5: #{tpu_custom_call.1} parent=1 // pred_fallthru
      _
    // Predicated region
    $region6: #{tpu_custom_call.1} parent=1 // pred_check
      _
    $region7: #{tpu_custom_call.1} parent=1 // pred_check_branch
      %14 = sbr.rel (0) target = $region9
    $region8: #{tpu_custom_call.1} parent=1 // pred_region
      _
    $region9: #{tpu_custom_call.1} parent=1 // pred_fallthru
      _
    // Predicated region
    $region10: #{tpu_custom_call.1} parent=1 // pred_check
      _
    $region11: #{tpu_custom_call.1} parent=1 // pred_check_branch
      %16 = sbr.rel (0) target = $region13
    $region12: #{tpu_custom_call.1} parent=1 // pred_region
      _
    $region13: #{tpu_custom_call.1} parent=1 // pred_fallthru
      _
    // Predicated region
    $region14: #{tpu_custom_call.1} parent=1 // pred_check
      _
    $region15: #{tpu_custom_call.1} parent=1 // pred_check_branch
      %18 = sbr.rel (0) target = $region17
    $region16: #{tpu_custom_call.1} parent=1 // pred_region
      _
    $region17: #{tpu_custom_call.1} parent=1 // pred_fallthru
      _
    // Predicated region
    $region18: #{tpu_custom_call.1} parent=1 // pred_check
      _
    $region19: #{tpu_custom_call.1} parent=1 // pred_check_branch
      %20 = sbr.rel (0) target = $region21
    $region20: #{tpu_custom_call.1} parent=1 // pred_region
      _
    $region21: #{tpu_custom_call.1} parent=1 // pred_fallthru
      _
    %v21 = vld [vmem:[%s0] sm:$0xff]
    %v22 = vld [vmem:[%s0 + $0x8] sm:$0xff]
    %v23 = vld [vmem:[%s2] sm:$0xf]
    %vm24 = vcmask 31744
    %v26 = vsel %vm24, %v21, 0
    %v29 = vsel %vm24, %v22, 0
    %vm31 = vcmask 1043456
    %v33 = vsel %vm31, %v23, 0
    %35 = vmatprep.subr.mxu0 0.0
    %36 = vmatpush1.msra.mxu0 %v33
    %37 = vmatprep.subr.mxu0 0.0
    %38 = vmatpush1.msra.mxu0 0.0
    %39 = vmatprep.subr.mxu0 0.0
    %40 = vmatpush1.msra.mxu0 0.0
    %41 = vmatprep.subr.mxu0 0.0
    %42 = vmatpush1.msra.mxu0 0.0
    %43 = vmatprep.subr.mxu0 0.0
    %44 = vmatpush1.msra.mxu0 0.0
    %45 = vmatprep.subr.mxu0 0.0
    %46 = vmatpush1.msra.mxu0 0.0
    %47 = vmatprep.subr.mxu0 0.0
    %48 = vmatpush1.msra.mxu0 0.0
    %49 = vmatprep.subr.mxu0 0.0
    %50 = vmatpush1.msra.mxu0 0.0
    %51 = vmatprep.subr.mxu0 0.0
    %52 = vmatpush1.msra.mxu0 0.0
    %53 = vmatprep.subr.mxu0 0.0
    %54 = vmatpush1.msra.mxu0 0.0
    %55 = vmatprep.subr.mxu0 0.0
    %56 = vmatpush1.msra.mxu0 0.0
    %57 = vmatprep.subr.mxu0 0.0
    %58 = vmatpush1.msra.mxu0 0.0
    %59 = vmatprep.subr.mxu0 0.0
    %60 = vmatpush1.msra.mxu0 0.0
    %61 = vmatprep.subr.mxu0 0.0
    %62 = vmatpush1.msra.mxu0 0.0
    %63 = vmatprep.subr.mxu0 0.0
    %64 = vmatpush1.msra.mxu0 0.0
    %65 = vmatprep.subr.mxu0 0.0
    %66 = vmatpush1.msra.mxu0 0.0
    %67 = vmatprep.subr.mxu0 0.0
    %68 = vmatpush1.msra.mxu0 0.0
    %69 = vmatprep.subr.mxu0 0.0
    %70 = vmatpush1.msra.mxu0 0.0
    %71 = vmatprep.subr.mxu0 0.0
    %72 = vmatpush1.msra.mxu0 0.0
    %73 = vmatprep.subr.mxu0 0.0
    %74 = vmatpush1.msra.mxu0 0.0
    %75 = vmatprep.subr.mxu0 0.0
    %76 = vmatpush1.msra.mxu0 0.0
    %77 = vmatprep.subr.mxu0 0.0
    %78 = vmatpush1.msra.mxu0 0.0
    %79 = vmatprep.subr.mxu0 0.0
    %80 = vmatpush1.msra.mxu0 0.0
    %81 = vmatprep.subr.mxu0 0.0
    %82 = vmatpush1.msra.mxu0 0.0
    %83 = vmatprep.subr.mxu0 0.0
    %84 = vmatpush1.msra.mxu0 0.0
    %85 = vmatprep.subr.mxu0 0.0
    %86 = vmatpush1.msra.mxu0 0.0
    %87 = vmatprep.subr.mxu0 0.0
    %88 = vmatpush1.msra.mxu0 0.0
    %89 = vmatprep.subr.mxu0 0.0
    %90 = vmatpush1.msra.mxu0 0.0
    %91 = vmatprep.subr.mxu0 0.0
    %92 = vmatpush1.msra.mxu0 0.0
    %93 = vmatprep.subr.mxu0 0.0
    %94 = vmatpush1.msra.mxu0 0.0
    %95 = vmatprep.subr.mxu0 0.0
    %96 = vmatpush1.msra.mxu0 0.0
    %97 = vmatprep.subr.mxu0 0.0
    %98 = vmatpush1.msra.mxu0 0.0
    %99 = vmatprep.mubr.f32.mxu0 0.0
    %100 = vmatmul.mubr.f32.gmra.mrb[0].mxu0 %v26
    %v101 = vpop.f32.mrb[0].mxu0
    %v102 = vadd.f32 0.0, %v101
    %v103 = vpop.f32.mrb[0].mxu0
    %104 = vmatprep.mubr.f32.mxu0 0.0
    %105 = vmatmul.mubr.f32.gmra.mrb[0].mxu0 %v29
    %v106 = vpop.f32.mrb[0].mxu0
    %v107 = vadd.f32 0.0, %v106
    %v108 = vpop.f32.mrb[0].mxu0
    %109 = vdwg.mxu0
    loop: start=1, step=1, limit=12
    $region22: #{tpu_custom_call.1} parent=1 // loop_pre_header
      _
    $region23: #{tpu_custom_call.1} parent=1 // loop_header
      %s111 = sphi 1, %s115
      %p112 = scmp.ge.s32.totalorder %s111, 12
      %v116 = vphi %v102, %v207
      %v117 = vphi %v107, %v208
    $region24: #{tpu_custom_call.1} parent=1 // loop_header_branch
      %114 = sbr.rel (%p112) target = $region28
    $region25: #{tpu_custom_call.1} parent=1 // loop_body
      %s118 = smul.u32 %s111, 16
      %s119 = scalar_lea.vmem %s0, %s118
      %v120 = vld [vmem:[%s119] sm:$0xff]
      %v121 = vld [vmem:[%s119 + $0x8] sm:$0xff]
      %v122 = vld [vmem:[%s2] sm:$0xf]
      %v124 = vsel %vm24, %v120, 0
      %v127 = vsel %vm24, %v121, 0
      %v130 = vsel %vm31, %v122, 0
      %132 = vmatprep.subr.mxu0 0.0
      %133 = vmatpush1.msra.mxu0 %v130
      %134 = vmatprep.subr.mxu0 0.0
      %135 = vmatpush1.msra.mxu0 0.0
      %136 = vmatprep.subr.mxu0 0.0
      %137 = vmatpush1.msra.mxu0 0.0
      %138 = vmatprep.subr.mxu0 0.0
      %139 = vmatpush1.msra.mxu0 0.0
      %140 = vmatprep.subr.mxu0 0.0
      %141 = vmatpush1.msra.mxu0 0.0
      %142 = vmatprep.subr.mxu0 0.0
      %143 = vmatpush1.msra.mxu0 0.0
      %144 = vmatprep.subr.mxu0 0.0
      %145 = vmatpush1.msra.mxu0 0.0
      %146 = vmatprep.subr.mxu0 0.0
      %147 = vmatpush1.msra.mxu0 0.0
      %148 = vmatprep.subr.mxu0 0.0
      %149 = vmatpush1.msra.mxu0 0.0
      %150 = vmatprep.subr.mxu0 0.0
      %151 = vmatpush1.msra.mxu0 0.0
      %152 = vmatprep.subr.mxu0 0.0
      %153 = vmatpush1.msra.mxu0 0.0
      %154 = vmatprep.subr.mxu0 0.0
      %155 = vmatpush1.msra.mxu0 0.0
      %156 = vmatprep.subr.mxu0 0.0
      %157 = vmatpush1.msra.mxu0 0.0
      %158 = vmatprep.subr.mxu0 0.0
      %159 = vmatpush1.msra.mxu0 0.0
      %160 = vmatprep.subr.mxu0 0.0
      %161 = vmatpush1.msra.mxu0 0.0
      %162 = vmatprep.subr.mxu0 0.0
      %163 = vmatpush1.msra.mxu0 0.0
      %164 = vmatprep.subr.mxu0 0.0
      %165 = vmatpush1.msra.mxu0 0.0
      %166 = vmatprep.subr.mxu0 0.0
      %167 = vmatpush1.msra.mxu0 0.0
      %168 = vmatprep.subr.mxu0 0.0
      %169 = vmatpush1.msra.mxu0 0.0
      %170 = vmatprep.subr.mxu0 0.0
      %171 = vmatpush1.msra.mxu0 0.0
      %172 = vmatprep.subr.mxu0 0.0
      %173 = vmatpush1.msra.mxu0 0.0
      %174 = vmatprep.subr.mxu0 0.0
      %175 = vmatpush1.msra.mxu0 0.0
      %176 = vmatprep.subr.mxu0 0.0
      %177 = vmatpush1.msra.mxu0 0.0
      %178 = vmatprep.subr.mxu0 0.0
      %179 = vmatpush1.msra.mxu0 0.0
      %180 = vmatprep.subr.mxu0 0.0
      %181 = vmatpush1.msra.mxu0 0.0
      %182 = vmatprep.subr.mxu0 0.0
      %183 = vmatpush1.msra.mxu0 0.0
      %184 = vmatprep.subr.mxu0 0.0
      %185 = vmatpush1.msra.mxu0 0.0
      %186 = vmatprep.subr.mxu0 0.0
      %187 = vmatpush1.msra.mxu0 0.0
      %188 = vmatprep.subr.mxu0 0.0
      %189 = vmatpush1.msra.mxu0 0.0
      %190 = vmatprep.subr.mxu0 0.0
      %191 = vmatpush1.msra.mxu0 0.0
      %192 = vmatprep.subr.mxu0 0.0
      %193 = vmatpush1.msra.mxu0 0.0
      %194 = vmatprep.subr.mxu0 0.0
      %195 = vmatpush1.msra.mxu0 0.0
      %196 = vmatprep.mubr.f32.mxu0 0.0
      %197 = vmatmul.mubr.f32.gmra.mrb[0].mxu0 %v124
      %v198 = vpop.f32.mrb[0].mxu0
      %v199 = vadd.f32 0.0, %v198
      %v200 = vpop.f32.mrb[0].mxu0
      %201 = vmatprep.mubr.f32.mxu0 0.0
      %202 = vmatmul.mubr.f32.gmra.mrb[0].mxu0 %v127
      %v203 = vpop.f32.mrb[0].mxu0
      %v204 = vadd.f32 0.0, %v203
      %v205 = vpop.f32.mrb[0].mxu0
      %206 = vdwg.mxu0
      %v207 = vmax.f32 %v116, %v199
      %v208 = vmax.f32 %v117, %v204
    $region26: #{tpu_custom_call.1} parent=1 // loop_footer
      %s115 = sadd.s32 1, %s111
    $region27: #{tpu_custom_call.1} parent=1 // loop_footer_branch
      %110 = sbr.rel target = $region23
    $region28: #{tpu_custom_call.1} parent=1 // loop_exit
      _
    %v209 = vld [vmem:[%s1] sm:$0xff]
    %v210 = vld [vmem:[%s1 + $0x8] sm:$0xff]
    %v211 = vld [vmem:[%s3] sm:$0xf]
    %v212 = vld [vmem:[%s4] sm:$0x1]
    %v214 = vlaneseq
    %v215 = vshrl.u32 %v214, 7
    %v216 = vsub.s32 0, %v215
    %v217 = vrot.slane %v212, %v216
    %v220 = vsel %vm24, %v209, 0
    %v223 = vsel %vm24, %v210, 0
    %v226 = vsel %vm31, %v211, 0
    %228 = vmatprep.subr.mxu0 0.0
    %229 = vmatpush1.msra.mxu0 %v226
    %230 = vmatprep.subr.mxu0 0.0
    %231 = vmatpush1.msra.mxu0 0.0
    %232 = vmatprep.subr.mxu0 0.0
    %233 = vmatpush1.msra.mxu0 0.0
    %234 = vmatprep.subr.mxu0 0.0
    %235 = vmatpush1.msra.mxu0 0.0
    %236 = vmatprep.subr.mxu0 0.0
    %237 = vmatpush1.msra.mxu0 0.0
    %238 = vmatprep.subr.mxu0 0.0
    %239 = vmatpush1.msra.mxu0 0.0
    %240 = vmatprep.subr.mxu0 0.0
    %241 = vmatpush1.msra.mxu0 0.0
    %242 = vmatprep.subr.mxu0 0.0
    %243 = vmatpush1.msra.mxu0 0.0
    %244 = vmatprep.subr.mxu0 0.0
    %245 = vmatpush1.msra.mxu0 0.0
    %246 = vmatprep.subr.mxu0 0.0
    %247 = vmatpush1.msra.mxu0 0.0
    %248 = vmatprep.subr.mxu0 0.0
    %249 = vmatpush1.msra.mxu0 0.0
    %250 = vmatprep.subr.mxu0 0.0
    %251 = vmatpush1.msra.mxu0 0.0
    %252 = vmatprep.subr.mxu0 0.0
    %253 = vmatpush1.msra.mxu0 0.0
    %254 = vmatprep.subr.mxu0 0.0
    %255 = vmatpush1.msra.mxu0 0.0
    %256 = vmatprep.subr.mxu0 0.0
    %257 = vmatpush1.msra.mxu0 0.0
    %258 = vmatprep.subr.mxu0 0.0
    %259 = vmatpush1.msra.mxu0 0.0
    %260 = vmatprep.subr.mxu0 0.0
    %261 = vmatpush1.msra.mxu0 0.0
    %262 = vmatprep.subr.mxu0 0.0
    %263 = vmatpush1.msra.mxu0 0.0
    %264 = vmatprep.subr.mxu0 0.0
    %265 = vmatpush1.msra.mxu0 0.0
    %266 = vmatprep.subr.mxu0 0.0
    %267 = vmatpush1.msra.mxu0 0.0
    %268 = vmatprep.subr.mxu0 0.0
    %269 = vmatpush1.msra.mxu0 0.0
    %270 = vmatprep.subr.mxu0 0.0
    %271 = vmatpush1.msra.mxu0 0.0
    %272 = vmatprep.subr.mxu0 0.0
    %273 = vmatpush1.msra.mxu0 0.0
    %274 = vmatprep.subr.mxu0 0.0
    %275 = vmatpush1.msra.mxu0 0.0
    %276 = vmatprep.subr.mxu0 0.0
    %277 = vmatpush1.msra.mxu0 0.0
    %278 = vmatprep.subr.mxu0 0.0
    %279 = vmatpush1.msra.mxu0 0.0
    %280 = vmatprep.subr.mxu0 0.0
    %281 = vmatpush1.msra.mxu0 0.0
    %282 = vmatprep.subr.mxu0 0.0
    %283 = vmatpush1.msra.mxu0 0.0
    %284 = vmatprep.subr.mxu0 0.0
    %285 = vmatpush1.msra.mxu0 0.0
    %286 = vmatprep.subr.mxu0 0.0
    %287 = vmatpush1.msra.mxu0 0.0
    %288 = vmatprep.subr.mxu0 0.0
    %289 = vmatpush1.msra.mxu0 0.0
    %290 = vmatprep.subr.mxu0 0.0
    %291 = vmatpush1.msra.mxu0 0.0
    %292 = vmatprep.mubr.f32.mxu0 0.0
    %293 = vmatmul.mubr.f32.gmra.mrb[0].mxu0 %v220
    %v294 = vpop.f32.mrb[0].mxu0
    %v295 = vadd.f32 %v217, %v294
    %v296 = vpop.f32.mrb[0].mxu0
    %297 = vmatprep.mubr.f32.mxu0 0.0
    %298 = vmatmul.mubr.f32.gmra.mrb[0].mxu0 %v223
    %v299 = vpop.f32.mrb[0].mxu0
    %v300 = vadd.f32 %v217, %v299
    %v301 = vpop.f32.mrb[0].mxu0
    %302 = vdwg.mxu0
    %v303 = vadd.f32 %v116, %v295
    %v304 = vadd.f32 %v117, %v300
    %vm305 = vcmask 261120
    %306 = vst.msk [vmem:[#allocation2] sm:$0xff] %vm305, %v303
    %307 = vst.msk [vmem:[#allocation2 + $0x8] sm:$0xff] %vm305, %v304
    // Predicated region
    $region29: #{tpu_custom_call.1} parent=1 // pred_check
      _
    $region30: #{tpu_custom_call.1} parent=1 // pred_check_branch
      %309 = sbr.rel (0) target = $region32
    $region31: #{tpu_custom_call.1} parent=1 // pred_region
      %s311 = ssub.s32 256, 256
      %312 = vsyncadd [#allocation3], %s311
      %s313 = sshll.u32 [#allocation2], 4
      %s314 = int_to_ptr.vmem [resolvable:$true] %s313
      %319 = dma.vmem_to_hbm [thread:$0]  %s314, 256, %s5, [#allocation3], 128, 128, 8
    $region32: #{tpu_custom_call.1} parent=1 // pred_fallthru
      _
    // Predicated region
    $region33: #{tpu_custom_call.1} parent=1 // pred_check
      _
    $region34: #{tpu_custom_call.1} parent=1 // pred_check_branch
      %321 = sbr.rel (0) target = $region36
    $region35: #{tpu_custom_call.1} parent=1 // pred_region
      %322 = dma.done [#allocation3], 256
    $region36: #{tpu_custom_call.1} parent=1 // pred_fallthru
      _
    %323 = vsyncpa [#allocation3], 1

</llo_original>
